<compile_context>
chip_gen: v7x
topology: tpu7x:2x2x1
jax: 0.10.0
libtpu: 0.0.40
codegen_flags: <defaults>
</compile_context>

<pallas_src>
import functools
import math

import jax
import jax.numpy as jnp
from jax.experimental import pallas as pl
from jax.experimental.pallas import tpu as pltpu

EPS = 1e-07

_LANES = 128
_SUBLANES = 8
_ROW_TILE_CAP = 2048           # 2048 rows * 128 lanes * 4 B = 1 MiB f32 tile
_PALLAS_MIN_ELEMS = 64 * 1024  # below this, pure JAX is faster than a launch


def _round_up(a, b):
    return (a + b - 1) // b * b


def _log_sum_kernel(x_ref, out_ref, *, c, tb, total, masked):
    """Partial sum of log(x + c) over one lane-dense (tb, 128) tile.

    Emits an (8, 128) block of partial sums (rows folded mod 8) so the output
    store is a full, unmasked vreg tile.  When `masked`, elements whose flat
    index is >= `total` (lane-pad tail and ragged-edge garbage) are masked to
    1.0 BEFORE the log and zeroed exactly afterwards.
    """
    x = x_ref[...].astype(jnp.float32)

    if masked:
        row = jax.lax.broadcasted_iota(jnp.int32, (tb, _LANES), 0)
        lane = jax.lax.broadcasted_iota(jnp.int32, (tb, _LANES), 1)
        elem = (pl.program_id(0) * tb + row) * _LANES + lane
        valid = elem < total
        y = jnp.log(jnp.where(valid, x, 1.0) + c)   # garbage can't NaN/-inf
        y = jnp.where(valid, y, 0.0)                 # contributes exactly 0
    else:
        y = jnp.log(x + c)

    out_ref[...] = jnp.sum(y.reshape(tb // _SUBLANES, _SUBLANES, _LANES), axis=0)


def _contrast_loss_jax(x, n_data):
    """Pure-JAX reference / small-shape fast path (mirrors the torch module)."""
    bsz = x.shape[0]
    m = x.shape[1] - 1
    pn = 1.0 / float(n_data)
    c = m * pn + EPS
    xf = x.astype(jnp.float32)
    p_pos = xf[:, 0, :]
    log_d1 = jnp.log(p_pos / (p_pos + c))
    p_neg = xf[:, 1:, :]
    log_d0 = jnp.log((m * pn) / (p_neg + c))
    return -(jnp.sum(log_d1, axis=0) + jnp.sum(log_d0.reshape(-1, 1), axis=0)) / bsz


def contrast_loss(x, n_data, *, force_pallas=None):
    """x: (bsz, N, 1) scores, N = m + 1 (1 positive + m negatives). Returns (1,) f32."""
    bsz, n = int(x.shape[0]), int(x.shape[1])
    m = n - 1
    pn = 1.0 / float(n_data)
    c = m * pn + EPS
    total = bsz * n                                 # trailing dim is 1

    use_pallas = force_pallas if force_pallas is not None else total >= _PALLAS_MIN_ELEMS
    if not use_pallas:
        return _contrast_loss_jax(x, n_data)

    # --- positive-column term: only `bsz` logs -> tiny, stays in plain JAX ---
    p_pos = x[:, 0].reshape(-1).astype(jnp.float32)
    pos_sum = jnp.sum(jnp.log(p_pos))

    # --- lane-dense layout: flatten row-major, view as (rows, 128) ---
    x_flat = x.reshape(total)                       # free bitcast, keeps dtype
    total_p = _round_up(total, _SUBLANES * _LANES)  # rows become a multiple of 8
    if total_p != total:
        # <1024-element tail only; skipped entirely when already aligned.
        x_flat = jnp.pad(x_flat, (0, total_p - total), constant_values=1)
    rows = total_p // _LANES
    x_tiles = x_flat.reshape(rows, _LANES)

    # --- row-tile selection: ~1 MiB tiles, and >=2 tiles for v7x megacore ---
    if rows > 2 * _SUBLANES:
        tb = min(_ROW_TILE_CAP, _round_up(pl.cdiv(rows, 2), _SUBLANES))
    else:
        tb = rows
    num_tiles = pl.cdiv(rows, tb)
    masked = (num_tiles * tb * _LANES) != total

    kernel = functools.partial(_log_sum_kernel, c=c, tb=tb, total=total, masked=masked)

    itemsize = jnp.dtype(x.dtype).itemsize
    cost = pl.CostEstimate(
        flops=3 * total_p,                          # add-c + fold/reduce adds
        transcendentals=total_p,                    # one log per streamed element
        bytes_accessed=total_p * itemsize + num_tiles * _SUBLANES * _LANES * 4,
    )

    partials = pl.pallas_call(
        kernel,
        out_shape=jax.ShapeDtypeStruct((num_tiles * _SUBLANES, _LANES), jnp.float32),
        grid=(num_tiles,),
        in_specs=[pl.BlockSpec((tb, _LANES), lambda i: (i, 0))],
        out_specs=pl.BlockSpec((_SUBLANES, _LANES), lambda i: (i, 0)),
        compiler_params=pltpu.CompilerParams(
            dimension_semantics=("parallel",),
        ),
        cost_estimate=cost,
    )(x_tiles)

    # --- tiny finish in plain JAX ---
    denom_sum = jnp.sum(partials)                   # = sum over real elems of log(x + c)
    k_const = bsz * m * math.log(m * pn) if m > 0 else 0.0
    loss = -(pos_sum + k_const - denom_sum) / bsz
    return loss.reshape(1)


if __name__ == "__main__":
    key = jax.random.PRNGKey(0)
    k1, k2, k3 = jax.random.split(key, 3)

    # 1) Small shape matching the module's typical tiny deployment (forced
    #    through the Pallas path to exercise the kernel).
    bsz, n_contrast, n_data = 2, 8, 128
    x_small = jax.random.uniform(k1, (bsz, n_contrast, 1), dtype=jnp.float32,
                                 minval=0.01, maxval=0.99)
    loss = contrast_loss(x_small, n_data, force_pallas=True)
    jax.block_until_ready(loss)
    ref = _contrast_loss_jax(x_small, n_data)
    assert loss.shape == (1,)
    assert jnp.allclose(loss, ref, rtol=2e-4, atol=1e-3), (loss, ref)

    # auto-dispatch fast path (pure JAX) agrees trivially
    loss_auto = contrast_loss(x_small, n_data)
    assert jnp.allclose(loss_auto, ref, rtol=1e-5, atol=1e-5), (loss_auto, ref)

    # 2) Ragged multi-tile case: exercises the in-kernel flat-index mask and
    #    the >=2-tile megacore split.
    bsz2, n2, n_data2 = 300, 17, 5000
    x_med = jax.random.uniform(k2, (bsz2, n2, 1), dtype=jnp.float32,
                               minval=0.01, maxval=0.99)
    loss2 = contrast_loss(x_med, n_data2, force_pallas=True)
    jax.block_until_ready(loss2)
    ref2 = _contrast_loss_jax(x_med, n_data2)
    assert jnp.allclose(loss2, ref2, rtol=2e-4, atol=1e-3), (loss2, ref2)

    # 3) Aligned case (no pad, no mask) through the auto-dispatch Pallas path.
    bsz3, n3, n_data3 = 512, 128, 16384
    x_big = jax.random.uniform(k3, (bsz3, n3, 1), dtype=jnp.float32,
                               minval=0.01, maxval=0.99)
    loss3 = contrast_loss(x_big, n_data3)
    jax.block_until_ready(loss3)
    ref3 = _contrast_loss_jax(x_big, n_data3)
    assert jnp.allclose(loss3, ref3, rtol=2e-4, atol=1e-3), (loss3, ref3)

    print("KERNEL_OK")
</pallas_src>

<mosaic_0001>
module attributes {stable_mosaic.version = 11 : i64} {
  func.func @_log_sum_kernel(%arg0: i32, %arg1: memref<8x128xf32, #tpu.memory_space<vmem>>, %arg2: memref<8x128xf32, #tpu.memory_space<vmem>>) attributes {dimension_semantics = [#tpu.dimension_semantics<parallel>], iteration_bounds = array<i64: 1>, scalar_prefetch = 0 : i64, scratch_operands = 0 : i64, tpu.core_type = #tpu.core_type<tc>, window_params = [{transform_indices = @transform_0, window_bounds = array<i64: 8, 128>}, {transform_indices = @transform_1, window_bounds = array<i64: 8, 128>}]} {
    %c0 = arith.constant 0 : index
    %c0_0 = arith.constant 0 : index
    %0 = vector.load %arg1[%c0, %c0_0] : memref<8x128xf32, #tpu.memory_space<vmem>>, vector<8x128xf32>
    %1 = tpu.iota {dimensions = array<i32: 0>} : vector<8x128xi32>
    %2 = tpu.iota {dimensions = array<i32: 1>} : vector<8x128xi32>
    %c8_i32 = arith.constant 8 : i32
    %3 = arith.muli %arg0, %c8_i32 : i32
    %4 = vector.broadcast %3 : i32 to vector<8x128xi32>
    %5 = arith.addi %4, %1 : vector<8x128xi32>
    %c128_i32 = arith.constant 128 : i32
    %6 = vector.broadcast %c128_i32 : i32 to vector<8x128xi32>
    %7 = arith.muli %5, %6 : vector<8x128xi32>
    %8 = arith.addi %7, %2 : vector<8x128xi32>
    %c16_i32 = arith.constant 16 : i32
    %9 = vector.broadcast %c16_i32 : i32 to vector<8x128xi32>
    %10 = arith.cmpi slt, %8, %9 : vector<8x128xi32>
    %cst = arith.constant 1.000000e+00 : f32
    %11 = vector.broadcast %cst : f32 to vector<8x128xf32>
    %12 = arith.select %10, %0, %11 : vector<8x128xi1>, vector<8x128xf32>
    %cst_1 = arith.constant 5.468760e-02 : f32
    %13 = vector.broadcast %cst_1 : f32 to vector<8x128xf32>
    %14 = arith.addf %12, %13 : vector<8x128xf32>
    %15 = math.log %14 : vector<8x128xf32>
    %cst_2 = arith.constant 0.000000e+00 : f32
    %16 = vector.broadcast %cst_2 : f32 to vector<8x128xf32>
    %17 = arith.select %10, %15, %16 : vector<8x128xi1>, vector<8x128xf32>
    %18 = vector.shape_cast %17 : vector<8x128xf32> to vector<1x8x128xf32>
    %cst_3 = arith.constant dense<0.000000e+00> : vector<8x128xf32>
    %19 = vector.multi_reduction <add>, %18, %cst_3 [0] : vector<1x8x128xf32> to vector<8x128xf32>
    %c0_4 = arith.constant 0 : index
    %c0_5 = arith.constant 0 : index
    %20 = vector.load %arg2[%c0_4, %c0_5] : memref<8x128xf32, #tpu.memory_space<vmem>>, vector<8x128xf32>
    tpu.vector_store %arg2[%c0_4, %c0_5], %19 {strides = array<i32>} : memref<8x128xf32, #tpu.memory_space<vmem>>, vector<8x128xf32>,
    return
  }
  func.func @transform_0(%arg0: i32) -> (i32, i32) {
    %c0_i32 = arith.constant 0 : i32
    %c0_i32_0 = arith.constant 0 : i32
    return %arg0, %c0_i32 : i32, i32
  }
  func.func @transform_1(%arg0: i32) -> (i32, i32) {
    %c0_i32 = arith.constant 0 : i32
    %c0_i32_0 = arith.constant 0 : i32
    return %arg0, %c0_i32 : i32, i32
  }
}

</mosaic_0001>

<llo_original>
// kernel: tpu_custom_call.1
$region0: #{tpu_custom_call.1}
  #allocation0 [shape = 'u32[]', space=smem, size = 0x4, offset = 0x4, fixed_abs, tag = 'smem constant byte address 0x4 - core index']
  #allocation1 [shape = 'u32[144,128]{1,0:T(1,128)}', space=vmem, size = 0x12000, scoped, tag = 'internal scratch']
  %s0 = inlined_call_operand.hbm [shape: f32[8,128], index: 0, kind: input, shape index: {}]
  %s1 = inlined_call_operand.hbm [shape: f32[8,128], index: 1, kind: output, shape index: {}]
  %s2 = sld [smem:[#allocation0]]
  $region18: #{tpu_custom_call.1} parent=0
    _
  %s4 = ssub.s32 1, %s2
  %s5 = scalar_select 0, %s4, %s2
  $region1: #{tpu_custom_call.1} parent=0
    #allocation2 [shape = 'u8[4096]{0}', space=vmem, size = 0x1000, scoped, tag = 'input window, operand 0, single buffered']
    #allocation3 [shape = 's32[1]{0}', space=sflag, size = 0x4, scoped, tag = 'scoped memory for tpu_custom_call.1']
    #allocation4 [shape = 's32[1]{0}', space=sflag, size = 0x4, scoped, tag = 'scoped memory for tpu_custom_call.1']
    #allocation5 [shape = 'u8[4096]{0}', space=vmem, size = 0x1000, scoped, tag = 'output window, operand 0, single buffered']
    %6 = vsyncpa [#allocation3], 0
    %7 = vsyncpa [#allocation4], 0
    // Predicated region
    $region2: #{tpu_custom_call.1} parent=1 // pred_check
      _
    $region3: #{tpu_custom_call.1} parent=1 // pred_check_branch
      %9 = sbr.rel (0) target = $region5
    $region4: #{tpu_custom_call.1} parent=1 // pred_region
      %s11 = ssub.s32 128, 128
      %12 = vsyncadd [#allocation3], %s11
      %s14 = sshll.u32 [#allocation2], 4
      %s15 = int_to_ptr.vmem [resolvable:$true] %s14
      %17 = dma.hbm_to_vmem [thread:$0]  %s0, 128, %s15, [#allocation3]
    $region5: #{tpu_custom_call.1} parent=1 // pred_fallthru
      _
    // Predicated region
    $region6: #{tpu_custom_call.1} parent=1 // pred_check
      _
    $region7: #{tpu_custom_call.1} parent=1 // pred_check_branch
      %19 = sbr.rel (0) target = $region9
    $region8: #{tpu_custom_call.1} parent=1 // pred_region
      %20 = dma.done [#allocation3], 128
    $region9: #{tpu_custom_call.1} parent=1 // pred_fallthru
      _
    %v21 = vld [vmem:[#allocation2] sm:$0xff]
    %v22 = vlaneseq
    %v23 = vshrl.u32 %v22, 7
    %v24 = vlaneseq
    %v25 = vand.u32 %v24, 127
    %s26 = smul.u32 0, 8
    %v27 = vstv %s26
    %v28 = vadd.s32 %v27, %v23
    %v29 = vmul.u32 %v28, 128
    %v30 = vadd.s32 %v29, %v25
    %vm31 = vcmp.lt.s32.totalorder %v30, 16
    %v32 = vsel %vm31, %v21, 1.0
    %v33 = vadd.f32 %v32, 0.0546876
    %v34 = vlog2.pop %v33
    %v35 = vmul.f32 %v34, 0.6931472
    %v36 = vsel %vm31, %v35, 0.0
    %v37 = vadd.f32 %v36, 0.0
    %38 = vst [vmem:[#allocation5] sm:$0xff] %v37
    // Predicated region
    $region10: #{tpu_custom_call.1} parent=1 // pred_check
      _
    $region11: #{tpu_custom_call.1} parent=1 // pred_check_branch
      %40 = sbr.rel (0) target = $region13
    $region12: #{tpu_custom_call.1} parent=1 // pred_region
      %s42 = ssub.s32 128, 128
      %43 = vsyncadd [#allocation4], %s42
      %s45 = sshll.u32 [#allocation5], 4
      %s46 = int_to_ptr.vmem [resolvable:$true] %s45
      %48 = dma.vmem_to_hbm [thread:$0]  %s46, 128, %s1, [#allocation4]
    $region13: #{tpu_custom_call.1} parent=1 // pred_fallthru
      _
    // Predicated region
    $region14: #{tpu_custom_call.1} parent=1 // pred_check
      _
    $region15: #{tpu_custom_call.1} parent=1 // pred_check_branch
      %50 = sbr.rel (0) target = $region17
    $region16: #{tpu_custom_call.1} parent=1 // pred_region
      %51 = dma.done [#allocation4], 128
    $region17: #{tpu_custom_call.1} parent=1 // pred_fallthru
      _
    %52 = vsyncpa [#allocation3], 1
    %53 = vsyncpa [#allocation4], 1

</llo_original>
